<compile_context>
chip_gen: v7x
topology: tpu7x:2x2x1
jax: 0.10.0
libtpu: 0.0.40
codegen_flags: <defaults>
</compile_context>

<pallas_src>
import jax
import jax.numpy as jnp
from jax.experimental import pallas as pl
from jax.experimental.pallas import tpu as pltpu


def _round_up(a, b):
    return -(-a // b) * b


def _node_feature_kernel(ids_ref, hi_ref, lo_ref, o_ref, acc_ref):
    # ids_ref: (R, C)  int32  fused indices per row (F atom ids | in-deg | out-deg,
    #                         degree ids already offset into the fused vocab)
    # hi_ref : (Vc, Hp) bf16  high half of this fused-table vocab chunk
    # lo_ref : (Vc, Hp) bf16  residual (f32 - hi) of this vocab chunk
    # o_ref  : (R, Hp)  f32   node features for this row tile
    # acc_ref: (R, Hp)  f32   accumulator, resident across the vocab-chunk axis
    k = pl.program_id(1)

    @pl.when(k == 0)
    def _():
        acc_ref[...] = jnp.zeros_like(acc_ref)

    R, C = ids_ref.shape
    Vc = hi_ref.shape[0]

    ids = ids_ref[...]
    # Global vocab ids covered by this chunk.
    v_iota = jax.lax.broadcasted_iota(jnp.int32, (R, Vc), 1) + k * Vc

    # counts[r, v] = number of fused index columns of row r equal to vocab id v.
    # atom_emb(x).sum(-2) + in_emb + out_emb == counts @ fused_table.
    # Accumulate as int32; one cast to bf16 after the loop (exact: counts <= C).
    counts = jnp.zeros((R, Vc), jnp.int32)
    for c in range(C):                                   # C is static & tiny (F + 2)
        counts = counts + (ids[:, c:c + 1] == v_iota).astype(jnp.int32)
    counts_bf = counts.astype(jnp.bfloat16)

    # counts @ f32_table == counts @ hi + counts @ lo : two bf16 MXU passes,
    # f32 accumulation, ~f32-level accuracy.
    acc_ref[...] += jnp.dot(counts_bf, hi_ref[...], preferred_element_type=jnp.float32)
    acc_ref[...] += jnp.dot(counts_bf, lo_ref[...], preferred_element_type=jnp.float32)

    @pl.when(k == pl.num_programs(1) - 1)
    def _():
        o_ref[...] = acc_ref[...]


def prepare_node_feature_tables(atom_tbl, in_tbl, out_tbl, *, v_chunk=256):
    """Build the fused / padded / hi-lo-split tables ONCE (param-init time)."""
    A1, H = atom_tbl.shape
    DIN, DOUT = in_tbl.shape[0], out_tbl.shape[0]

    fused = jnp.concatenate([atom_tbl, in_tbl, out_tbl], axis=0).astype(jnp.float32)
    v_tot = A1 + DIN + DOUT
    v_pad = _round_up(v_tot, v_chunk)            # lane-dense vocab (multiple of 256)
    h_pad = _round_up(H, 128)                    # lane-dense output rows
    fused = jnp.pad(fused, ((0, v_pad - v_tot), (0, h_pad - H)))

    hi = fused.astype(jnp.bfloat16)
    lo = (fused - hi.astype(jnp.float32)).astype(jnp.bfloat16)
    return dict(hi=hi, lo=lo, H=H, h_pad=h_pad, v_pad=v_pad, v_chunk=v_chunk,
                A1=A1, DIN=DIN, DOUT=DOUT)


def nano_node_feature(x, in_degree, out_degree, tables, graph_token,
                      *, max_tile_rows=256):
    B, N, F = x.shape
    H, h_pad = tables["H"], tables["h_pad"]
    v_pad, v_chunk = tables["v_pad"], tables["v_chunk"]
    A1, DIN, DOUT = tables["A1"], tables["DIN"], tables["DOUT"]

    rows = B * N
    C = F + 2

    # Fused index tensor: atom ids | (in_degree + A1) | (out_degree + A1 + DIN).
    # Clamp degree/atom ids so dirty inputs can't silently read a neighbouring
    # table section (nn.Embedding would raise).
    atom_ids = jnp.clip(x.reshape(rows, F).astype(jnp.int32), 0, A1 - 1)
    ind = jnp.clip(in_degree.reshape(rows, 1).astype(jnp.int32), 0, DIN - 1) + A1
    outd = jnp.clip(out_degree.reshape(rows, 1).astype(jnp.int32), 0, DOUT - 1) + A1 + DIN
    ids = jnp.concatenate([atom_ids, ind, outd], axis=1)         # (rows, C)

    # Row tiling: multiple of 8 sublanes; keep >= 2 row-grid steps when possible
    # so the "parallel" axis can shard across both v7x TensorCores.
    rows_pad = _round_up(rows, 8)
    tile_rows = min(max_tile_rows, rows_pad)
    if rows_pad // tile_rows < 2 and tile_rows >= 16:
        tile_rows = _round_up(tile_rows // 2, 8)
    rows_pad = _round_up(rows_pad, tile_rows)
    if rows_pad != rows:
        # Padded rows hit fused-table row 0 only; sliced off below.
        ids = jnp.concatenate([ids, jnp.zeros((rows_pad - rows, C), jnp.int32)], axis=0)

    grid = (rows_pad // tile_rows, v_pad // v_chunk)

    # VMEM budget: double-buffered ids / table chunks / out + accumulator,
    # with headroom; never below the 32 MiB default, never above v7x's 64 MiB.
    vmem_bytes = (2 * tile_rows * C * 4
                  + 2 * 2 * v_chunk * h_pad * 2
                  + 2 * tile_rows * h_pad * 4
                  + tile_rows * h_pad * 4)
    vmem_limit = int(min(64 * 1024 * 1024, max(4 * vmem_bytes, 32 * 1024 * 1024)))

    out = pl.pallas_call(
        _node_feature_kernel,
        out_shape=jax.ShapeDtypeStruct((rows_pad, h_pad), jnp.float32),
        grid_spec=pltpu.PrefetchScalarGridSpec(
            num_scalar_prefetch=0,
            grid=grid,
            in_specs=[
                pl.BlockSpec((tile_rows, C), lambda i, k: (i, 0)),
                pl.BlockSpec((v_chunk, h_pad), lambda i, k: (k, 0)),
                pl.BlockSpec((v_chunk, h_pad), lambda i, k: (k, 0)),
            ],
            out_specs=pl.BlockSpec((tile_rows, h_pad), lambda i, k: (i, 0)),
            scratch_shapes=[pltpu.VMEM((tile_rows, h_pad), jnp.float32)],
        ),
        compiler_params=pltpu.CompilerParams(
            dimension_semantics=("parallel", "arbitrary"),
            vmem_limit_bytes=vmem_limit),
    )(ids, tables["hi"], tables["lo"])

    node_feat = out[:rows, :H].reshape(B, N, H)
    graph_tok = jnp.broadcast_to(graph_token[None].astype(node_feat.dtype), (B, 1, H))
    return jnp.concatenate([graph_tok, node_feat], axis=1)       # (B, N+1, H)


def reference(x, ind, outd, atom_tbl, in_tbl, out_tbl, gtok):
    nf = jnp.take(atom_tbl, x, axis=0).sum(axis=-2)
    nf = nf + jnp.take(in_tbl, ind, axis=0) + jnp.take(out_tbl, outd, axis=0)
    gt = jnp.broadcast_to(gtok[None], (x.shape[0], 1, gtok.shape[1]))
    return jnp.concatenate([gt, nf], axis=1)


if __name__ == "__main__":
    # Module hyper-params (num_heads / n_layers do not affect this forward).
    num_atoms = 16
    num_in_degree = 16
    num_out_degree = 16
    hidden_dim = 32

    # Input shapes
    B, N, F = 2, 8, 3

    key = jax.random.PRNGKey(0)
    k_atom, k_in, k_out, k_gt, k_x, k_id, k_od = jax.random.split(key, 7)

    # init_params equivalent: Embedding weights ~ N(0, 0.02).
    atom_tbl = 0.02 * jax.random.normal(k_atom, (num_atoms + 1, hidden_dim), jnp.float32)
    in_tbl = 0.02 * jax.random.normal(k_in, (num_in_degree, hidden_dim), jnp.float32)
    out_tbl = 0.02 * jax.random.normal(k_out, (num_out_degree, hidden_dim), jnp.float32)
    graph_token = 0.02 * jax.random.normal(k_gt, (1, hidden_dim), jnp.float32)

    x = jax.random.randint(k_x, (B, N, F), 1, num_atoms + 1, jnp.int32)
    in_degree = jax.random.randint(k_id, (B, N), 0, num_in_degree, jnp.int32)
    out_degree = jax.random.randint(k_od, (B, N), 0, num_out_degree, jnp.int32)

    # Table prep is hoisted out of the forward (done once at param-init time).
    tables = prepare_node_feature_tables(atom_tbl, in_tbl, out_tbl)

    out = nano_node_feature(x, in_degree, out_degree, tables, graph_token)
    out = jax.block_until_ready(out)

    ref = reference(x, in_degree, out_degree, atom_tbl, in_tbl, out_tbl, graph_token)
    assert out.shape == (B, N + 1, hidden_dim)
    assert jnp.allclose(out, ref, atol=1e-5, rtol=1e-5), "mismatch vs reference"

    print("KERNEL_OK")
</pallas_src>

<mosaic_0001>
module attributes {stable_mosaic.version = 11 : i64} {
  func.func @_node_feature_kernel(%arg0: i32, %arg1: i32, %arg2: memref<8x5xi32, #tpu.memory_space<vmem>>, %arg3: memref<256x128xbf16, #tpu.memory_space<vmem>>, %arg4: memref<256x128xbf16, #tpu.memory_space<vmem>>, %arg5: memref<8x128xf32, #tpu.memory_space<vmem>>, %arg6: memref<8x128xf32, #tpu.memory_space<vmem>>) attributes {dimension_semantics = [#tpu.dimension_semantics<parallel>, #tpu.dimension_semantics<arbitrary>], iteration_bounds = array<i64: 2, 1>, scalar_prefetch = 0 : i64, scratch_operands = 1 : i64, tpu.core_type = #tpu.core_type<tc>, window_params = [{transform_indices = @transform_0, window_bounds = array<i64: 8, 5>}, {transform_indices = @transform_1, window_bounds = array<i64: 256, 128>}, {transform_indices = @transform_2, window_bounds = array<i64: 256, 128>}, {transform_indices = @transform_3, window_bounds = array<i64: 8, 128>}]} {
    %c0_i32 = arith.constant 0 : i32
    %0 = arith.cmpi eq, %arg1, %c0_i32 : i32
    %1 = arith.extui %0 : i1 to i32
    %c0_i32_0 = arith.constant 0 : i32
    %2 = arith.cmpi ne, %1, %c0_i32_0 : i32
    scf.if %2 {
      %cst_18 = arith.constant 0.000000e+00 : f32
      %48 = vector.broadcast %cst_18 : f32 to vector<8x128xf32>
      %c0_19 = arith.constant 0 : index
      %c0_20 = arith.constant 0 : index
      %49 = vector.load %arg6[%c0_19, %c0_20] : memref<8x128xf32, #tpu.memory_space<vmem>>, vector<8x128xf32>
      tpu.vector_store %arg6[%c0_19, %c0_20], %48 {strides = array<i32>} : memref<8x128xf32, #tpu.memory_space<vmem>>, vector<8x128xf32>,
    } else {
    }
    %c0 = arith.constant 0 : index
    %c0_1 = arith.constant 0 : index
    %3 = vector.load %arg2[%c0, %c0_1] : memref<8x5xi32, #tpu.memory_space<vmem>>, vector<8x5xi32>
    %4 = tpu.iota {dimensions = array<i32: 1>} : vector<8x256xi32>
    %c256_i32 = arith.constant 256 : i32
    %5 = arith.muli %arg1, %c256_i32 : i32
    %6 = vector.broadcast %5 : i32 to vector<8x256xi32>
    %7 = arith.addi %4, %6 : vector<8x256xi32>
    %c0_i32_2 = arith.constant 0 : i32
    %8 = vector.broadcast %c0_i32_2 : i32 to vector<8x256xi32>
    %9 = vector.extract_strided_slice %3 {offsets = [0, 0], sizes = [8, 1], strides = [1, 1]} : vector<8x5xi32> to vector<8x1xi32>
    %10 = vector.broadcast %9 : vector<8x1xi32> to vector<8x256xi32>
    %11 = arith.cmpi eq, %10, %7 : vector<8x256xi32>
    %12 = arith.extui %11 : vector<8x256xi1> to vector<8x256xi32>
    %13 = arith.addi %8, %12 : vector<8x256xi32>
    %14 = vector.extract_strided_slice %3 {offsets = [0, 1], sizes = [8, 1], strides = [1, 1]} : vector<8x5xi32> to vector<8x1xi32>
    %15 = vector.broadcast %14 : vector<8x1xi32> to vector<8x256xi32>
    %16 = arith.cmpi eq, %15, %7 : vector<8x256xi32>
    %17 = arith.extui %16 : vector<8x256xi1> to vector<8x256xi32>
    %18 = arith.addi %13, %17 : vector<8x256xi32>
    %19 = vector.extract_strided_slice %3 {offsets = [0, 2], sizes = [8, 1], strides = [1, 1]} : vector<8x5xi32> to vector<8x1xi32>
    %20 = vector.broadcast %19 : vector<8x1xi32> to vector<8x256xi32>
    %21 = arith.cmpi eq, %20, %7 : vector<8x256xi32>
    %22 = arith.extui %21 : vector<8x256xi1> to vector<8x256xi32>
    %23 = arith.addi %18, %22 : vector<8x256xi32>
    %24 = vector.extract_strided_slice %3 {offsets = [0, 3], sizes = [8, 1], strides = [1, 1]} : vector<8x5xi32> to vector<8x1xi32>
    %25 = vector.broadcast %24 : vector<8x1xi32> to vector<8x256xi32>
    %26 = arith.cmpi eq, %25, %7 : vector<8x256xi32>
    %27 = arith.extui %26 : vector<8x256xi1> to vector<8x256xi32>
    %28 = arith.addi %23, %27 : vector<8x256xi32>
    %29 = vector.extract_strided_slice %3 {offsets = [0, 4], sizes = [8, 1], strides = [1, 1]} : vector<8x5xi32> to vector<8x1xi32>
    %30 = vector.broadcast %29 : vector<8x1xi32> to vector<8x256xi32>
    %31 = arith.cmpi eq, %30, %7 : vector<8x256xi32>
    %32 = arith.extui %31 : vector<8x256xi1> to vector<8x256xi32>
    %33 = arith.addi %28, %32 : vector<8x256xi32>
    %34 = arith.sitofp %33 : vector<8x256xi32> to vector<8x256xbf16>
    %c0_3 = arith.constant 0 : index
    %c0_4 = arith.constant 0 : index
    %35 = vector.load %arg6[%c0_3, %c0_4] : memref<8x128xf32, #tpu.memory_space<vmem>>, vector<8x128xf32>
    %c0_5 = arith.constant 0 : index
    %c0_6 = arith.constant 0 : index
    %36 = vector.load %arg3[%c0_5, %c0_6] : memref<256x128xbf16, #tpu.memory_space<vmem>>, vector<256x128xbf16>
    %cst = arith.constant dense<0.000000e+00> : vector<8x128xf32>
    %37 = tpu.matmul %34, %36, %cst {dimension_numbers = #tpu.dot_dimension_numbers<[1], [0], [0], [1], [0, 0, 1, 1], [], []>} : vector<8x256xbf16>, vector<256x128xbf16>, vector<8x128xf32> -> vector<8x128xf32>
    %38 = arith.addf %35, %37 : vector<8x128xf32>
    %c0_7 = arith.constant 0 : index
    %c0_8 = arith.constant 0 : index
    %39 = vector.load %arg6[%c0_7, %c0_8] : memref<8x128xf32, #tpu.memory_space<vmem>>, vector<8x128xf32>
    tpu.vector_store %arg6[%c0_7, %c0_8], %38 {strides = array<i32>} : memref<8x128xf32, #tpu.memory_space<vmem>>, vector<8x128xf32>,
    %c0_9 = arith.constant 0 : index
    %c0_10 = arith.constant 0 : index
    %40 = vector.load %arg6[%c0_9, %c0_10] : memref<8x128xf32, #tpu.memory_space<vmem>>, vector<8x128xf32>
    %c0_11 = arith.constant 0 : index
    %c0_12 = arith.constant 0 : index
    %41 = vector.load %arg4[%c0_11, %c0_12] : memref<256x128xbf16, #tpu.memory_space<vmem>>, vector<256x128xbf16>
    %cst_13 = arith.constant dense<0.000000e+00> : vector<8x128xf32>
    %42 = tpu.matmul %34, %41, %cst_13 {dimension_numbers = #tpu.dot_dimension_numbers<[1], [0], [0], [1], [0, 0, 1, 1], [], []>} : vector<8x256xbf16>, vector<256x128xbf16>, vector<8x128xf32> -> vector<8x128xf32>
    %43 = arith.addf %40, %42 : vector<8x128xf32>
    %c0_14 = arith.constant 0 : index
    %c0_15 = arith.constant 0 : index
    %44 = vector.load %arg6[%c0_14, %c0_15] : memref<8x128xf32, #tpu.memory_space<vmem>>, vector<8x128xf32>
    tpu.vector_store %arg6[%c0_14, %c0_15], %43 {strides = array<i32>} : memref<8x128xf32, #tpu.memory_space<vmem>>, vector<8x128xf32>,
    %c0_i32_16 = arith.constant 0 : i32
    %45 = arith.cmpi eq, %arg1, %c0_i32_16 : i32
    %46 = arith.extui %45 : i1 to i32
    %c0_i32_17 = arith.constant 0 : i32
    %47 = arith.cmpi ne, %46, %c0_i32_17 : i32
    scf.if %47 {
      %c0_18 = arith.constant 0 : index
      %c0_19 = arith.constant 0 : index
      %48 = vector.load %arg6[%c0_18, %c0_19] : memref<8x128xf32, #tpu.memory_space<vmem>>, vector<8x128xf32>
      %c0_20 = arith.constant 0 : index
      %c0_21 = arith.constant 0 : index
      %49 = vector.load %arg5[%c0_20, %c0_21] : memref<8x128xf32, #tpu.memory_space<vmem>>, vector<8x128xf32>
      tpu.vector_store %arg5[%c0_20, %c0_21], %48 {strides = array<i32>} : memref<8x128xf32, #tpu.memory_space<vmem>>, vector<8x128xf32>,
    } else {
    }
    return
  }
  func.func @transform_0(%arg0: i32, %arg1: i32) -> (i32, i32) {
    %c0_i32 = arith.constant 0 : i32
    %c0_i32_0 = arith.constant 0 : i32
    return %arg0, %c0_i32 : i32, i32
  }
  func.func @transform_1(%arg0: i32, %arg1: i32) -> (i32, i32) {
    %c0_i32 = arith.constant 0 : i32
    %c0_i32_0 = arith.constant 0 : i32
    return %arg1, %c0_i32 : i32, i32
  }
  func.func @transform_2(%arg0: i32, %arg1: i32) -> (i32, i32) {
    %c0_i32 = arith.constant 0 : i32
    %c0_i32_0 = arith.constant 0 : i32
    return %arg1, %c0_i32 : i32, i32
  }
  func.func @transform_3(%arg0: i32, %arg1: i32) -> (i32, i32) {
    %c0_i32 = arith.constant 0 : i32
    %c0_i32_0 = arith.constant 0 : i32
    return %arg0, %c0_i32 : i32, i32
  }
}

</mosaic_0001>

<llo_original>
// kernel: tpu_custom_call.1
$region0: #{tpu_custom_call.1}
  #allocation0 [shape = 'u32[]', space=smem, size = 0x4, offset = 0x4, fixed_abs, tag = 'smem constant byte address 0x4 - core index']
  #allocation1 [shape = 'u32[144,128]{1,0:T(1,128)}', space=vmem, size = 0x12000, scoped, tag = 'internal scratch']
  #allocation2 [shape = 'f32[8,128]{1,0:T(8,128)}', space=vmem, size = 0x1000, scoped, tag = 'scratch operand']
  %s0 = inlined_call_operand.vmem [shape: s32[16,5], index: 0, kind: input, shape index: {}]
  %s1 = inlined_call_operand.hbm [shape: bf16[256,128], index: 1, kind: input, shape index: {}]
  %s2 = inlined_call_operand.hbm [shape: bf16[256,128], index: 2, kind: input, shape index: {}]
  %s3 = inlined_call_operand.hbm [shape: f32[16,128], index: 3, kind: output, shape index: {}]
  %s4 = sld [smem:[#allocation0]]
  $region61: #{tpu_custom_call.1} parent=0
    _
  %s6 = ssub.s32 1, %s4
  %s7 = scalar_select 0, %s6, %s4
  $region1: #{tpu_custom_call.1} parent=0
    #allocation3 [shape = 'u8[65536]{0}', space=vmem, size = 0x10000, scoped, tag = 'input window, operand 1, single buffered']
    #allocation4 [shape = 's32[2]{0}', space=sflag, size = 0x8, scoped, tag = 'scoped memory for tpu_custom_call.1']
    #allocation5 [shape = 's32[2]{0}', space=sflag, size = 0x8, scoped, tag = 'scoped memory for tpu_custom_call.1']
    #allocation6 [shape = 'u8[65536]{0}', space=vmem, size = 0x10000, scoped, tag = 'input window, operand 2, single buffered']
    #allocation7 [shape = 's32[1]{0}', space=sflag, size = 0x4, scoped, tag = 'scoped memory for tpu_custom_call.1']
    #allocation8 [shape = 'u8[8192]{0}', space=vmem, size = 0x2000, scoped, tag = 'output window, operand 0']
    %8 = vsyncpa [#allocation4], 0
    %9 = vsyncpa [#allocation7], 0
    %10 = vsyncpa [#allocation5], 0
    %s11 = scalar_lea.sflag [#allocation5], 1
    %12 = vsyncpa %s11, 0
    loop: start=0, step=1, limit=4
    $region2: #{tpu_custom_call.1} parent=1 // loop_pre_header
      _
    $region3: #{tpu_custom_call.1} parent=1 // loop_header
      %s14 = sphi 0, %s18
      %p15 = scmp.ge.s32.totalorder %s14, 4
      %s21 = sphi 0, %s33
      %s22 = sphi 0, %s29
      %s23 = sphi 0, %s21
      %s24 = sphi 0, %s22
      %s25 = sphi 0, %s23
      %s26 = sphi 0, %s24
      %s36 = sphi 0, %s38
      %s39 = sphi 0, %s36
      %s40 = sphi 0, %s39
      %s56 = sphi 0, %s40
      %s62 = sphi 0, %s64
      %s65 = sphi 0, %s62
      %s66 = sphi 0, %s65
      %s82 = sphi 0, %s66
      %s88 = sphi 0, %s90
      %s91 = sphi 0, %s88
      %s92 = sphi 0, %s91
      %s108 = sphi 0, %s92
      %s114 = sphi 0, %s116
      %s117 = sphi 0, %s114
      %s118 = sphi 0, %s117
      %s134 = sphi 0, %s118
    $region4: #{tpu_custom_call.1} parent=1 // loop_header_branch
      %17 = sbr.rel (%p15) target = $region8
    $region5: #{tpu_custom_call.1} parent=1 // loop_body
      %s19 = ssub.s32 %s14, 1
      %s20 = ssub.s32 %s14, 2
      %s27 = sadd.s32 1, %s22
      %p28 = scmp.ge.s32.totalorder %s27, 1
      %s29 = scalar_select %p28, 0, %s27
      %s30 = sadd.s32 1, %s21
      %s31 = scalar_select %p28, %s30, %s21
      %p32 = scmp.ge.s32.totalorder %s31, 2
      %s33 = scalar_select %p32, 0, %s31
      %s34 = ssub.s32 %s21, %s33
      %p35 = scmp.eq.s32.totalorder %s34, 0
      %s37 = sadd.s32 %s36, 1
      %s38 = scalar_select %p35, %s36, %s37
      %p41 = pneg %p35
      %p42 = scmp.eq.s32.totalorder %s14, 1
      %p43 = por %p41, %p42
      %p44 = scmp.ne.s32.totalorder %s36, %s39
      %p45 = scmp.eq.s32.totalorder %s14, 0
      %p46 = por %p44, %p45
      %p47 = scmp.ne.s32.totalorder %s36, %s39
      %p48 = scmp.eq.s32.totalorder %s19, 1
      %p49 = por %p47, %p48
      %p50 = scmp.ne.s32.totalorder %s39, %s40
      %p51 = scmp.eq.s32.totalorder %s19, 0
      %p52 = por %p50, %p51
      %p53 = scmp.ne.s32.totalorder %s39, %s40
      %p54 = scmp.eq.s32.totalorder %s20, 1
      %p55 = por %p53, %p54
      %p57 = scmp.ne.s32.totalorder %s40, %s56
      %p58 = scmp.eq.s32.totalorder %s20, 0
      %p59 = por %p57, %p58
      %s60 = ssub.s32 %s22, %s29
      %p61 = scmp.eq.s32.totalorder %s60, 0
      %s63 = sadd.s32 %s62, 1
      %s64 = scalar_select %p61, %s62, %s63
      %p67 = pneg %p61
      %p68 = scmp.eq.s32.totalorder %s14, 1
      %p69 = por %p67, %p68
      %p70 = scmp.ne.s32.totalorder %s62, %s65
      %p71 = scmp.eq.s32.totalorder %s14, 0
      %p72 = por %p70, %p71
      %p73 = scmp.ne.s32.totalorder %s62, %s65
      %p74 = scmp.eq.s32.totalorder %s19, 1
      %p75 = por %p73, %p74
      %p76 = scmp.ne.s32.totalorder %s65, %s66
      %p77 = scmp.eq.s32.totalorder %s19, 0
      %p78 = por %p76, %p77
      %p79 = scmp.ne.s32.totalorder %s65, %s66
      %p80 = scmp.eq.s32.totalorder %s20, 1
      %p81 = por %p79, %p80
      %p83 = scmp.ne.s32.totalorder %s66, %s82
      %p84 = scmp.eq.s32.totalorder %s20, 0
      %p85 = por %p83, %p84
      %s86 = ssub.s32 %s22, %s29
      %p87 = scmp.eq.s32.totalorder %s86, 0
      %s89 = sadd.s32 %s88, 1
      %s90 = scalar_select %p87, %s88, %s89
      %p93 = pneg %p87
      %p94 = scmp.eq.s32.totalorder %s14, 1
      %p95 = por %p93, %p94
      %p96 = scmp.ne.s32.totalorder %s88, %s91
      %p97 = scmp.eq.s32.totalorder %s14, 0
      %p98 = por %p96, %p97
      %p99 = scmp.ne.s32.totalorder %s88, %s91
      %p100 = scmp.eq.s32.totalorder %s19, 1
      %p101 = por %p99, %p100
      %p102 = scmp.ne.s32.totalorder %s91, %s92
      %p103 = scmp.eq.s32.totalorder %s19, 0
      %p104 = por %p102, %p103
      %p105 = scmp.ne.s32.totalorder %s91, %s92
      %p106 = scmp.eq.s32.totalorder %s20, 1
      %p107 = por %p105, %p106
      %p109 = scmp.ne.s32.totalorder %s92, %s108
      %p110 = scmp.eq.s32.totalorder %s20, 0
      %p111 = por %p109, %p110
      %s112 = ssub.s32 %s21, %s33
      %p113 = scmp.eq.s32.totalorder %s112, 0
      %s115 = sadd.s32 %s114, 1
      %s116 = scalar_select %p113, %s114, %s115
      %p119 = pneg %p113
      %p120 = scmp.eq.s32.totalorder %s14, 1
      %p121 = por %p119, %p120
      %p122 = scmp.ne.s32.totalorder %s114, %s117
      %p123 = scmp.eq.s32.totalorder %s14, 0
      %p124 = por %p122, %p123
      %p125 = scmp.ne.s32.totalorder %s114, %s117
      %p126 = scmp.eq.s32.totalorder %s19, 1
      %p127 = por %p125, %p126
      %p128 = scmp.ne.s32.totalorder %s117, %s118
      %p129 = scmp.eq.s32.totalorder %s19, 0
      %p130 = por %p128, %p129
      %p131 = scmp.ne.s32.totalorder %s117, %s118
      %p132 = scmp.eq.s32.totalorder %s20, 1
      %p133 = por %p131, %p132
      %p135 = scmp.ne.s32.totalorder %s118, %s134
      %p136 = scmp.eq.s32.totalorder %s20, 0
      %p137 = por %p135, %p136
      %p138 = scmp.le.s32.totalorder 1, %s14
      %p139 = scmp.lt.s32.totalorder %s14, 3
      %p140 = pnand %p138, %p139
      %p141 = pneg %p140
      // Predicated region
      $region9: #{tpu_custom_call.1} parent=5 // pred_check
        _
      $region10: #{tpu_custom_call.1} parent=5 // pred_check_branch
        %143 = sbr.rel (%p140) target = $region12
      $region11: #{tpu_custom_call.1} parent=5 // pred_region
        %s144 = ssub.s32 %s14, 1
        // Predicated region
        $region13: #{tpu_custom_call.1} parent=11 // pred_check
          %p145 = pneg %p78
        $region14: #{tpu_custom_call.1} parent=11 // pred_check_branch
          %147 = sbr.rel (%p145) target = $region16
        $region15: #{tpu_custom_call.1} parent=11 // pred_region
          %s148 = smul.u32 32, %s24
          %s150 = ssub.s32 2048, 2048
          %151 = vsyncadd [#allocation4], %s150
          %s152 = smul.addr %s148, 64
          %s153 = scalar_lea.hbm %s1, %s152
          %s154 = sshll.u32 [#allocation3], 4
          %s155 = int_to_ptr.vmem [resolvable:$true] %s154
          %160 = dma.hbm_to_vmem [thread:$0]  %s153, 2048, %s155, [#allocation4], 64, 64, 4
        $region16: #{tpu_custom_call.1} parent=11 // pred_fallthru
          _
        // Predicated region
        $region17: #{tpu_custom_call.1} parent=11 // pred_check
          %p161 = pneg %p104
        $region18: #{tpu_custom_call.1} parent=11 // pred_check_branch
          %163 = sbr.rel (%p161) target = $region20
        $region19: #{tpu_custom_call.1} parent=11 // pred_region
          %s164 = smul.u32 32, %s24
          %s166 = ssub.s32 2048, 2048
          %167 = vsyncadd [#allocation7], %s166
          %s168 = smul.addr %s164, 64
          %s169 = scalar_lea.hbm %s2, %s168
          %s170 = sshll.u32 [#allocation6], 4
          %s171 = int_to_ptr.vmem [resolvable:$true] %s170
          %176 = dma.hbm_to_vmem [thread:$0]  %s169, 2048, %s171, [#allocation7], 64, 64, 4
        $region20: #{tpu_custom_call.1} parent=11 // pred_fallthru
          _
      $region12: #{tpu_custom_call.1} parent=5 // pred_fallthru
        _
      %p177 = scmp.lt.s32.totalorder %s14, 2
      // Predicated region
      $region21: #{tpu_custom_call.1} parent=5 // pred_check
        %p178 = pneg %p177
      $region22: #{tpu_custom_call.1} parent=5 // pred_check_branch
        %180 = sbr.rel (%p178) target = $region24
      $region23: #{tpu_custom_call.1} parent=5 // pred_region
        // Predicated region
        $region25: #{tpu_custom_call.1} parent=23 // pred_check
          %p181 = pneg %p46
        $region26: #{tpu_custom_call.1} parent=23 // pred_check_branch
          %183 = sbr.rel (%p181) target = $region28
        $region27: #{tpu_custom_call.1} parent=23 // pred_region
          %p184 = scmp.lt.s32.totalorder %s21, 1
          %s185 = scalar_select %p184, %s21, 1
          %s186 = smul.addr %s185, 8
          %s187 = scalar_lea.vmem %s0, %s186
        $region28: #{tpu_custom_call.1} parent=23 // pred_fallthru
          _
      $region24: #{tpu_custom_call.1} parent=5 // pred_fallthru
        _
      %p188 = scmp.le.s32.totalorder 1, %s14
      %p189 = scmp.lt.s32.totalorder %s14, 3
      %p190 = pnand %p188, %p189
      %p191 = pneg %p190
      // Predicated region
      $region29: #{tpu_custom_call.1} parent=5 // pred_check
        _
      $region30: #{tpu_custom_call.1} parent=5 // pred_check_branch
        %193 = sbr.rel (%p190) target = $region32
      $region31: #{tpu_custom_call.1} parent=5 // pred_region
        %s194 = ssub.s32 %s14, 1
        // Predicated region
        $region33: #{tpu_custom_call.1} parent=31 // pred_check
          %p195 = pneg %p78
        $region34: #{tpu_custom_call.1} parent=31 // pred_check_branch
          %197 = sbr.rel (%p195) target = $region36
        $region35: #{tpu_custom_call.1} parent=31 // pred_region
          %198 = dma.done [#allocation4], 2048
        $region36: #{tpu_custom_call.1} parent=31 // pred_fallthru
          _
        // Predicated region
        $region37: #{tpu_custom_call.1} parent=31 // pred_check
          %p199 = pneg %p104
        $region38: #{tpu_custom_call.1} parent=31 // pred_check_branch
          %201 = sbr.rel (%p199) target = $region40
        $region39: #{tpu_custom_call.1} parent=31 // pred_region
          %202 = dma.done [#allocation7], 2048
        $region40: #{tpu_custom_call.1} parent=31 // pred_fallthru
          _
        %p203 = scmp.lt.s32.totalorder %s23, 1
        %s204 = scalar_select %p203, %s23, 1
        %s205 = smul.addr %s204, 8
        %s206 = scalar_lea.vmem %s0, %s205
        %p207 = pneg %p52
        %p208 = pneg %p49
        %p209 = pneg %p78
        %p210 = pneg %p75
        %p211 = pneg %p104
        %p212 = pneg %p101
        %p213 = pneg %p130
        %p214 = pneg %p127
        %s215 = sand.u32 %s117, 1
        %s216 = scalar_lea.sflag [#allocation5], %s215
        %s217 = sand.u32 %s117, 1
        %s218 = smul.addr %s217, 8
        %s219 = scalar_lea.vmem [#allocation8], %s218
        %p220 = scmp.lt.s32.totalorder %s23, 1
        %s221 = scalar_select %p220, %s23, 1
        %s222 = smul.addr %s221, 8
        %s223 = scalar_lea.vmem %s0, %s222
        %s224 = smul.u32 32, %s24
        %s225 = smul.u32 32, %s24
        %p227 = scmp.eq.s32.totalorder %s24, 0
        // Predicated region
        $region41: #{tpu_custom_call.1} parent=31 // pred_check
          %p228 = pneg %p227
        $region42: #{tpu_custom_call.1} parent=31 // pred_check_branch
          %230 = sbr.rel (%p228) target = $region44
        $region43: #{tpu_custom_call.1} parent=31 // pred_region
          %231 = vst [vmem:[#allocation2] sm:$0xff] 0.0
        $region44: #{tpu_custom_call.1} parent=31 // pred_fallthru
          _
        %v232 = vld [vmem:[%s223] sm:$0xff]
        %v233 = vlaneseq
        %v234 = vand.u32 %v233, 127
        %v235 = vadd.s32 %v234, 128
        %s236 = smul.u32 %s24, 256
        %v237 = vstv %s236
        %v238 = vadd.s32 %v234, %v237
        %v239 = vadd.s32 %v235, %v237
        %240 = vset.pattern.permute.xlu0 0
        %241 = vperm.xlu0 %240, %v232
        %v242 = vpop.permute.xlu0 %241
        %vm243 = vcmp.eq.s32.totalorder %v242, %v238
        %vm244 = vcmp.eq.s32.totalorder %v242, %v239
        %v245 = vsel %vm243, 1, 0
        %v246 = vsel %vm244, 1, 0
        %247 = vset.pattern.permute.xlu0 1
        %248 = vperm.xlu0 %247, %v232
        %v249 = vpop.permute.xlu0 %248
        %vm250 = vcmp.eq.s32.totalorder %v249, %v238
        %vm251 = vcmp.eq.s32.totalorder %v249, %v239
        %v252 = vsel %vm250, 1, 0
        %v253 = vsel %vm251, 1, 0
        %v254 = vadd.s32 %v245, %v252
        %v255 = vadd.s32 %v246, %v253
        %256 = vset.pattern.permute.xlu0 2
        %257 = vperm.xlu0 %256, %v232
        %v258 = vpop.permute.xlu0 %257
        %vm259 = vcmp.eq.s32.totalorder %v258, %v238
        %vm260 = vcmp.eq.s32.totalorder %v258, %v239
        %v261 = vsel %vm259, 1, 0
        %v262 = vsel %vm260, 1, 0
        %v263 = vadd.s32 %v254, %v261
        %v264 = vadd.s32 %v255, %v262
        %265 = vset.pattern.permute.xlu0 3
        %266 = vperm.xlu0 %265, %v232
        %v267 = vpop.permute.xlu0 %266
        %vm268 = vcmp.eq.s32.totalorder %v267, %v238
        %vm269 = vcmp.eq.s32.totalorder %v267, %v239
        %v270 = vsel %vm268, 1, 0
        %v271 = vsel %vm269, 1, 0
        %v272 = vadd.s32 %v263, %v270
        %v273 = vadd.s32 %v264, %v271
        %274 = vset.pattern.permute.xlu0 4
        %275 = vperm.xlu0 %274, %v232
        %v276 = vpop.permute.xlu0 %275
        %vm277 = vcmp.eq.s32.totalorder %v276, %v238
        %vm278 = vcmp.eq.s32.totalorder %v276, %v239
        %v279 = vsel %vm277, 1, 0
        %v280 = vsel %vm278, 1, 0
        %v281 = vadd.s32 %v272, %v279
        %v282 = vadd.s32 %v273, %v280
        %v283 = vcvt.s32.f32 %v281
        %v284 = vcvt.s32.f32 %v282
        %v285 = vpack.c.bf16 %v283, %v283
        %v286 = vpack.c.bf16 %v284, %v284
        %v287 = vld [vmem:[#allocation2] sm:$0xff]
        %v288 = vld [vmem:[#allocation3] sm:$0xf]
        %v289 = vld [vmem:[#allocation3 + $0x4] sm:$0xf]
        %v290 = vld [vmem:[#allocation3 + $0x8] sm:$0xf]
        %v291 = vld [vmem:[#allocation3 + $0xc] sm:$0xf]
        %v292 = vld [vmem:[#allocation3 + $0x10] sm:$0xf]
        %v293 = vld [vmem:[#allocation3 + $0x14] sm:$0xf]
        %v294 = vld [vmem:[#allocation3 + $0x18] sm:$0xf]
        %v295 = vld [vmem:[#allocation3 + $0x1c] sm:$0xf]
        %v296 = vld [vmem:[#allocation3 + $0x20] sm:$0xf]
        %v297 = vld [vmem:[#allocation3 + $0x24] sm:$0xf]
        %v298 = vld [vmem:[#allocation3 + $0x28] sm:$0xf]
        %v299 = vld [vmem:[#allocation3 + $0x2c] sm:$0xf]
        %v300 = vld [vmem:[#allocation3 + $0x30] sm:$0xf]
        %v301 = vld [vmem:[#allocation3 + $0x34] sm:$0xf]
        %v302 = vld [vmem:[#allocation3 + $0x38] sm:$0xf]
        %v303 = vld [vmem:[#allocation3 + $0x3c] sm:$0xf]
        %v304 = vld [vmem:[#allocation3 + $0x40] sm:$0xf]
        %v305 = vld [vmem:[#allocation3 + $0x44] sm:$0xf]
        %v306 = vld [vmem:[#allocation3 + $0x48] sm:$0xf]
        %v307 = vld [vmem:[#allocation3 + $0x4c] sm:$0xf]
        %v308 = vld [vmem:[#allocation3 + $0x50] sm:$0xf]
        %v309 = vld [vmem:[#allocation3 + $0x54] sm:$0xf]
        %v310 = vld [vmem:[#allocation3 + $0x58] sm:$0xf]
        %v311 = vld [vmem:[#allocation3 + $0x5c] sm:$0xf]
        %v312 = vld [vmem:[#allocation3 + $0x60] sm:$0xf]
        %v313 = vld [vmem:[#allocation3 + $0x64] sm:$0xf]
        %v314 = vld [vmem:[#allocation3 + $0x68] sm:$0xf]
        %v315 = vld [vmem:[#allocation3 + $0x6c] sm:$0xf]
        %v316 = vld [vmem:[#allocation3 + $0x70] sm:$0xf]
        %v317 = vld [vmem:[#allocation3 + $0x74] sm:$0xf]
        %v318 = vld [vmem:[#allocation3 + $0x78] sm:$0xf]
        %v319 = vld [vmem:[#allocation3 + $0x7c] sm:$0xf]
        %v352 = vunpack.c.l.b16 %v288
        %v353 = vunpack.c.l.b16 %v289
        %v354 = vunpack.c.l.b16 %v290
        %v355 = vunpack.c.l.b16 %v291
        %v356 = vunpack.c.l.b16 %v292
        %v357 = vunpack.c.l.b16 %v293
        %v358 = vunpack.c.l.b16 %v294
        %v359 = vunpack.c.l.b16 %v295
        %v360 = vunpack.c.l.b16 %v296
        %v361 = vunpack.c.l.b16 %v297
        %v362 = vunpack.c.l.b16 %v298
        %v363 = vunpack.c.l.b16 %v299
        %v364 = vunpack.c.l.b16 %v300
        %v365 = vunpack.c.l.b16 %v301
        %v366 = vunpack.c.l.b16 %v302
        %v367 = vunpack.c.l.b16 %v303
        %v368 = vunpack.c.l.b16 %v304
        %v369 = vunpack.c.l.b16 %v305
        %v370 = vunpack.c.l.b16 %v306
        %v371 = vunpack.c.l.b16 %v307
        %v372 = vunpack.c.l.b16 %v308
        %v373 = vunpack.c.l.b16 %v309
        %v374 = vunpack.c.l.b16 %v310
        %v375 = vunpack.c.l.b16 %v311
        %v376 = vunpack.c.l.b16 %v312
        %v377 = vunpack.c.l.b16 %v313
        %v378 = vunpack.c.l.b16 %v314
        %v379 = vunpack.c.l.b16 %v315
        %v380 = vunpack.c.l.b16 %v316
        %v381 = vunpack.c.l.b16 %v317
        %v382 = vunpack.c.l.b16 %v318
        %v383 = vunpack.c.l.b16 %v319
        %v384 = vpack.c.b16 %v353, %v352
        %v385 = vpack.c.b16 %v355, %v354
        %v386 = vpack.c.b16 %v357, %v356
        %v387 = vpack.c.b16 %v359, %v358
        %v388 = vpack.c.b16 %v361, %v360
        %v389 = vpack.c.b16 %v363, %v362
        %v390 = vpack.c.b16 %v365, %v364
        %v391 = vpack.c.b16 %v367, %v366
        %v392 = vpack.c.b16 %v369, %v368
        %v393 = vpack.c.b16 %v371, %v370
        %v394 = vpack.c.b16 %v373, %v372
        %v395 = vpack.c.b16 %v375, %v374
        %v396 = vpack.c.b16 %v377, %v376
        %v397 = vpack.c.b16 %v379, %v378
        %v398 = vpack.c.b16 %v381, %v380
        %v399 = vpack.c.b16 %v383, %v382
        %416 = vmatprep.subr.bf16.mxu0 0
        %417 = vmatpush1.bf16.msra.mxu0 %v384
        %418 = vmatprep.subr.bf16.mxu0 0
        %419 = vmatpush1.bf16.msra.mxu0 %v385
        %420 = vmatprep.subr.bf16.mxu0 0
        %421 = vmatpush1.bf16.msra.mxu0 %v386
        %422 = vmatprep.subr.bf16.mxu0 0
        %423 = vmatpush1.bf16.msra.mxu0 %v387
        %424 = vmatprep.subr.bf16.mxu0 0
        %425 = vmatpush1.bf16.msra.mxu0 %v388
        %426 = vmatprep.subr.bf16.mxu0 0
        %427 = vmatpush1.bf16.msra.mxu0 %v389
        %428 = vmatprep.subr.bf16.mxu0 0
        %429 = vmatpush1.bf16.msra.mxu0 %v390
        %430 = vmatprep.subr.bf16.mxu0 0
        %431 = vmatpush1.bf16.msra.mxu0 %v391
        %432 = vmatprep.subr.bf16.mxu0 0
        %433 = vmatpush1.bf16.msra.mxu0 %v392
        %434 = vmatprep.subr.bf16.mxu0 0
        %435 = vmatpush1.bf16.msra.mxu0 %v393
        %436 = vmatprep.subr.bf16.mxu0 0
        %437 = vmatpush1.bf16.msra.mxu0 %v394
        %438 = vmatprep.subr.bf16.mxu0 0
        %439 = vmatpush1.bf16.msra.mxu0 %v395
        %440 = vmatprep.subr.bf16.mxu0 0
        %441 = vmatpush1.bf16.msra.mxu0 %v396
        %442 = vmatprep.subr.bf16.mxu0 0
        %443 = vmatpush1.bf16.msra.mxu0 %v397
        %444 = vmatprep.subr.bf16.mxu0 0
        %445 = vmatpush1.bf16.msra.mxu0 %v398
        %446 = vmatprep.subr.bf16.mxu0 0
        %447 = vmatpush1.bf16.msra.mxu0 %v399
        %448 = vmatprep.mubr.bf16.mxu0 %v286
        %449 = vmatmul.mubr.bf16.gmra.mrb[0].mxu0 %v285
        %v450 = vpop.f32.mrb[0].mxu0
        %v451 = vadd.f32 0.0, %v450
        %v452 = vpop.f32.mrb[0].mxu0
        %v453 = vpop.f32.mrb[0].mxu0
        %v454 = vpop.f32.mrb[0].mxu0
        %455 = vdwg.mxu0
        %v456 = vadd.f32 %v287, %v451
        %457 = vst [vmem:[#allocation2] sm:$0xff] %v456
        %v458 = vld [vmem:[#allocation2] sm:$0xff]
        %v459 = vld [vmem:[#allocation6] sm:$0xf]
        %v460 = vld [vmem:[#allocation6 + $0x4] sm:$0xf]
        %v461 = vld [vmem:[#allocation6 + $0x8] sm:$0xf]
        %v462 = vld [vmem:[#allocation6 + $0xc] sm:$0xf]
        %v463 = vld [vmem:[#allocation6 + $0x10] sm:$0xf]
        %v464 = vld [vmem:[#allocation6 + $0x14] sm:$0xf]
        %v465 = vld [vmem:[#allocation6 + $0x18] sm:$0xf]
        %v466 = vld [vmem:[#allocation6 + $0x1c] sm:$0xf]
        %v467 = vld [vmem:[#allocation6 + $0x20] sm:$0xf]
        %v468 = vld [vmem:[#allocation6 + $0x24] sm:$0xf]
        %v469 = vld [vmem:[#allocation6 + $0x28] sm:$0xf]
        %v470 = vld [vmem:[#allocation6 + $0x2c] sm:$0xf]
        %v471 = vld [vmem:[#allocation6 + $0x30] sm:$0xf]
        %v472 = vld [vmem:[#allocation6 + $0x34] sm:$0xf]
        %v473 = vld [vmem:[#allocation6 + $0x38] sm:$0xf]
        %v474 = vld [vmem:[#allocation6 + $0x3c] sm:$0xf]
        %v475 = vld [vmem:[#allocation6 + $0x40] sm:$0xf]
        %v476 = vld [vmem:[#allocation6 + $0x44] sm:$0xf]
        %v477 = vld [vmem:[#allocation6 + $0x48] sm:$0xf]
        %v478 = vld [vmem:[#allocation6 + $0x4c] sm:$0xf]
        %v479 = vld [vmem:[#allocation6 + $0x50] sm:$0xf]
        %v480 = vld [vmem:[#allocation6 + $0x54] sm:$0xf]
        %v481 = vld [vmem:[#allocation6 + $0x58] sm:$0xf]
        %v482 = vld [vmem:[#allocation6 + $0x5c] sm:$0xf]
        %v483 = vld [vmem:[#allocation6 + $0x60] sm:$0xf]
        %v484 = vld [vmem:[#allocation6 + $0x64] sm:$0xf]
        %v485 = vld [vmem:[#allocation6 + $0x68] sm:$0xf]
        %v486 = vld [vmem:[#allocation6 + $0x6c] sm:$0xf]
        %v487 = vld [vmem:[#allocation6 + $0x70] sm:$0xf]
        %v488 = vld [vmem:[#allocation6 + $0x74] sm:$0xf]
        %v489 = vld [vmem:[#allocation6 + $0x78] sm:$0xf]
        %v490 = vld [vmem:[#allocation6 + $0x7c] sm:$0xf]
        %v523 = vunpack.c.l.b16 %v459
        %v524 = vunpack.c.l.b16 %v460
        %v525 = vunpack.c.l.b16 %v461
        %v526 = vunpack.c.l.b16 %v462
        %v527 = vunpack.c.l.b16 %v463
        %v528 = vunpack.c.l.b16 %v464
        %v529 = vunpack.c.l.b16 %v465
        %v530 = vunpack.c.l.b16 %v466
        %v531 = vunpack.c.l.b16 %v467
        %v532 = vunpack.c.l.b16 %v468
        %v533 = vunpack.c.l.b16 %v469
        %v534 = vunpack.c.l.b16 %v470
        %v535 = vunpack.c.l.b16 %v471
        %v536 = vunpack.c.l.b16 %v472
        %v537 = vunpack.c.l.b16 %v473
        %v538 = vunpack.c.l.b16 %v474
        %v539 = vunpack.c.l.b16 %v475
        %v540 = vunpack.c.l.b16 %v476
        %v541 = vunpack.c.l.b16 %v477
        %v542 = vunpack.c.l.b16 %v478
        %v543 = vunpack.c.l.b16 %v479
        %v544 = vunpack.c.l.b16 %v480
        %v545 = vunpack.c.l.b16 %v481
        %v546 = vunpack.c.l.b16 %v482
        %v547 = vunpack.c.l.b16 %v483
        %v548 = vunpack.c.l.b16 %v484
        %v549 = vunpack.c.l.b16 %v485
        %v550 = vunpack.c.l.b16 %v486
        %v551 = vunpack.c.l.b16 %v487
        %v552 = vunpack.c.l.b16 %v488
        %v553 = vunpack.c.l.b16 %v489
        %v554 = vunpack.c.l.b16 %v490
        %v555 = vpack.c.b16 %v524, %v523
        %v556 = vpack.c.b16 %v526, %v525
        %v557 = vpack.c.b16 %v528, %v527
        %v558 = vpack.c.b16 %v530, %v529
        %v559 = vpack.c.b16 %v532, %v531
        %v560 = vpack.c.b16 %v534, %v533
        %v561 = vpack.c.b16 %v536, %v535
        %v562 = vpack.c.b16 %v538, %v537
        %v563 = vpack.c.b16 %v540, %v539
        %v564 = vpack.c.b16 %v542, %v541
        %v565 = vpack.c.b16 %v544, %v543
        %v566 = vpack.c.b16 %v546, %v545
        %v567 = vpack.c.b16 %v548, %v547
        %v568 = vpack.c.b16 %v550, %v549
        %v569 = vpack.c.b16 %v552, %v551
        %v570 = vpack.c.b16 %v554, %v553
        %587 = vmatprep.subr.bf16.mxu0 0
        %588 = vmatpush1.bf16.msra.mxu0 %v555
        %589 = vmatprep.subr.bf16.mxu0 0
        %590 = vmatpush1.bf16.msra.mxu0 %v556
        %591 = vmatprep.subr.bf16.mxu0 0
        %592 = vmatpush1.bf16.msra.mxu0 %v557
        %593 = vmatprep.subr.bf16.mxu0 0
        %594 = vmatpush1.bf16.msra.mxu0 %v558
        %595 = vmatprep.subr.bf16.mxu0 0
        %596 = vmatpush1.bf16.msra.mxu0 %v559
        %597 = vmatprep.subr.bf16.mxu0 0
        %598 = vmatpush1.bf16.msra.mxu0 %v560
        %599 = vmatprep.subr.bf16.mxu0 0
        %600 = vmatpush1.bf16.msra.mxu0 %v561
        %601 = vmatprep.subr.bf16.mxu0 0
        %602 = vmatpush1.bf16.msra.mxu0 %v562
        %603 = vmatprep.subr.bf16.mxu0 0
        %604 = vmatpush1.bf16.msra.mxu0 %v563
        %605 = vmatprep.subr.bf16.mxu0 0
        %606 = vmatpush1.bf16.msra.mxu0 %v564
        %607 = vmatprep.subr.bf16.mxu0 0
        %608 = vmatpush1.bf16.msra.mxu0 %v565
        %609 = vmatprep.subr.bf16.mxu0 0
        %610 = vmatpush1.bf16.msra.mxu0 %v566
        %611 = vmatprep.subr.bf16.mxu0 0
        %612 = vmatpush1.bf16.msra.mxu0 %v567
        %613 = vmatprep.subr.bf16.mxu0 0
        %614 = vmatpush1.bf16.msra.mxu0 %v568
        %615 = vmatprep.subr.bf16.mxu0 0
        %616 = vmatpush1.bf16.msra.mxu0 %v569
        %617 = vmatprep.subr.bf16.mxu0 0
        %618 = vmatpush1.bf16.msra.mxu0 %v570
        %619 = vmatprep.mubr.bf16.mxu0 %v286
        %620 = vmatmul.mubr.bf16.gmra.mrb[0].mxu0 %v285
        %v621 = vpop.f32.mrb[0].mxu0
        %v622 = vadd.f32 0.0, %v621
        %v623 = vpop.f32.mrb[0].mxu0
        %v624 = vpop.f32.mrb[0].mxu0
        %v625 = vpop.f32.mrb[0].mxu0
        %626 = vdwg.mxu0
        %v627 = vadd.f32 %v458, %v622
        %628 = vst [vmem:[#allocation2] sm:$0xff] %v627
        // Predicated region
        $region45: #{tpu_custom_call.1} parent=31 // pred_check
          %p629 = pneg %p227
        $region46: #{tpu_custom_call.1} parent=31 // pred_check_branch
          %631 = sbr.rel (%p629) target = $region48
        $region47: #{tpu_custom_call.1} parent=31 // pred_region
          %v632 = vld [vmem:[#allocation2] sm:$0xff]
          %633 = vst [vmem:[%s219] sm:$0xff] %v632
        $region48: #{tpu_custom_call.1} parent=31 // pred_fallthru
          _
        %s634 = sand.u32 %s117, 1
        %s635 = scalar_lea.sflag [#allocation5], %s634
        %s636 = sand.u32 %s117, 1
        %s637 = smul.addr %s636, 8
        %s638 = scalar_lea.vmem [#allocation8], %s637
        // Predicated region
        $region49: #{tpu_custom_call.1} parent=31 // pred_check
          %p639 = pneg %p127
        $region50: #{tpu_custom_call.1} parent=31 // pred_check_branch
          %641 = sbr.rel (%p639) target = $region52
        $region51: #{tpu_custom_call.1} parent=31 // pred_region
          %s643 = ssub.s32 128, 128
          %644 = vsyncadd %s635, %s643
          %s645 = smul.addr %s23, 128
          %s646 = scalar_lea.hbm %s3, %s645
          %s648 = sshll.u32 %s638, 4
          %s649 = int_to_ptr.vmem [resolvable:$true] %s648
          %651 = dma.vmem_to_hbm [thread:$0]  %s649, 128, %s646, %s635
        $region52: #{tpu_custom_call.1} parent=31 // pred_fallthru
          _
      $region32: #{tpu_custom_call.1} parent=5 // pred_fallthru
        _
      %p652 = scmp.le.s32.totalorder 2, %s14
      // Predicated region
      $region53: #{tpu_custom_call.1} parent=5 // pred_check
        %p653 = pneg %p652
      $region54: #{tpu_custom_call.1} parent=5 // pred_check_branch
        %655 = sbr.rel (%p653) target = $region56
      $region55: #{tpu_custom_call.1} parent=5 // pred_region
        %s656 = ssub.s32 %s14, 2
        // Predicated region
        $region57: #{tpu_custom_call.1} parent=55 // pred_check
          %p657 = pneg %p133
        $region58: #{tpu_custom_call.1} parent=55 // pred_check_branch
          %659 = sbr.rel (%p657) target = $region60
        $region59: #{tpu_custom_call.1} parent=55 // pred_region
          %s660 = sand.u32 %s118, 1
          %s661 = scalar_lea.sflag [#allocation5], %s660
          %s662 = sand.u32 %s118, 1
          %s663 = smul.addr %s662, 8
          %s664 = scalar_lea.vmem [#allocation8], %s663
          %665 = dma.done %s661, 128
        $region60: #{tpu_custom_call.1} parent=55 // pred_fallthru
          _
      $region56: #{tpu_custom_call.1} parent=5 // pred_fallthru
        _
    $region6: #{tpu_custom_call.1} parent=1 // loop_footer
      %s18 = sadd.s32 1, %s14
    $region7: #{tpu_custom_call.1} parent=1 // loop_footer_branch
      %13 = sbr.rel target = $region3
    $region8: #{tpu_custom_call.1} parent=1 // loop_exit
      _
    %666 = vsyncpa [#allocation4], 1
    %s667 = scalar_lea.sflag [#allocation4], 1
    %668 = vsyncpa %s667, 1
    %669 = vsyncpa [#allocation7], 1
    %670 = vsyncpa [#allocation5], 1
    %s671 = scalar_lea.sflag [#allocation5], 1
    %672 = vsyncpa %s671, 1

</llo_original>
